<compile_context>
chip_gen: v7x
topology: tpu7x:2x2x1
jax: 0.10.0
libtpu: 0.0.40
codegen_flags: <defaults>
</compile_context>

<pallas_src>
import functools

import jax
import jax.numpy as jnp
from jax.experimental import pallas as pl
from jax.experimental.pallas import tpu as pltpu


def _bce_with_logits(x, y):
    # Numerically stable: max(x,0) - x*y + log(1 + exp(-|x|))
    return jnp.maximum(x, 0.0) - x * y + jnp.log1p(jnp.exp(-jnp.abs(x)))


def _neg_fill(dtype):
    """Most-negative fill for masking: -inf where representable, else finfo.min."""
    dtype = jnp.dtype(dtype)
    if dtype in (jnp.dtype(jnp.float32), jnp.dtype(jnp.bfloat16),
                 jnp.dtype(jnp.float16)):
        return jnp.array(-jnp.inf, dtype=dtype)
    # fp8 etc. cannot represent -inf (it would become NaN) -> finite min.
    return jnp.array(jnp.finfo(dtype).min, dtype=dtype)


def _bce2way_kernel(logit_ref, target_ref, frame_ref, out_ref, acc_ref, *,
                    w0, w1, inv_n, k, n_class, t_valid, t_tile):
    t = pl.program_id(1)
    n_t = pl.num_programs(1)

    # ---- init running max to -inf on first T step (per B block) ----
    @pl.when(t == 0)
    def _init():
        acc_ref[...] = jnp.full(acc_ref.shape, -jnp.inf, dtype=jnp.float32)

    # ---- steady state: fold one (b_tile, t_tile, cf) slab into the running max.
    def _fold(mask_tail):
        frame = frame_ref[0]                                    # (b_tile, t_tile, cf)
        if mask_tail:
            row = jax.lax.broadcasted_iota(jnp.int32, frame.shape, 1)
            valid = (t * t_tile + row) < t_valid
            frame = jnp.where(valid, frame, _neg_fill(frame.dtype))
        blk_max = jnp.max(frame, axis=1).astype(jnp.float32)    # (b_tile, cf)
        acc_ref[...] = jnp.maximum(acc_ref[...], blk_max)

    if t_valid % t_tile != 0:
        # Ragged last T block: mask only there, unmasked fast path otherwise.
        @pl.when(t < n_t - 1)
        def _steady():
            _fold(False)

        @pl.when(t == n_t - 1)
        def _last():
            _fold(True)
    else:
        _fold(False)

    # ---- epilogue (last T step only): un-fold lanes, BCE terms, partial sum ----
    @pl.when(t == n_t - 1)
    def _epilogue():
        if k == 1:
            clip = acc_ref[...]                                 # (b_tile, C)
        else:
            clip = acc_ref[:, 0:n_class]
            for j in range(1, k):                               # tiny static loop
                clip = jnp.maximum(clip, acc_ref[:, j * n_class:(j + 1) * n_class])

        logit = logit_ref[0].astype(jnp.float32)                # (b_tile, C)
        tgt = target_ref[0].astype(jnp.float32)                 # (b_tile, C)

        loss_sum = jnp.sum(_bce_with_logits(logit, tgt))
        aux_sum = jnp.sum(_bce_with_logits(clip, tgt))
        partial = (jnp.float32(w0) * loss_sum
                   + jnp.float32(w1) * aux_sum) * jnp.float32(inv_n)

        # Lane-dense scalar output: broadcast partial over the (1, 8, 128) block.
        out_ref[...] = jnp.full(out_ref.shape, partial, dtype=jnp.float32)


def _round_up(x, m):
    return ((x + m - 1) // m) * m


def _choose_time_fold(t, c):
    """Largest k dividing T with k*C <= 128, to make the minor dim lane-dense.

    If T has awkward factors, cf = k*C may stay < 128; that only costs VMEM /
    vreg padding (HBM reads remain contiguous), handled by padded sizing below.
    """
    if c >= 128:
        return 1
    k = 1
    for cand in range(1, 128 // c + 1):
        if t % cand == 0:
            k = cand
    return k


def _choose_b_tile(b, min_block_bytes_per_row, target_block_bytes):
    """Largest divisor of B leaving >= 2 (preferably an even number of) B
    blocks, so the 'parallel' grid axis shards across both v7x TensorCores."""
    if b < 2:
        # TODO(synk): for B == 1 on v7x the T axis could be split across the
        # two cores (per-half max to HBM + tiny BCE in the wrapper); skipped.
        return b
    divisors = [d for d in range(1, b) if b % d == 0]       # n_b = b // d >= 2
    fitting = [d for d in divisors
               if d * min_block_bytes_per_row <= target_block_bytes]
    pool = fitting if fitting else [min(divisors)]
    even = [d for d in pool if (b // d) % 2 == 0]
    pool = even if even else pool
    return max(pool)


def bce_2way_loss(logit, framewise_logit, target, weights=(1.0, 0.5),
                  target_block_bytes=12 * 1024 * 1024):
    """Pallas implementation of BCE2WayLoss.forward. Returns a scalar f32.

    `target_block_bytes` is the *VMEM-padded* size of one streamed framewise
    block (minor dim padded to 128 lanes, time rows to the dtype sublane
    multiple); the double-buffered working set is ~2x that.
    """
    b, c = logit.shape
    _, t, _ = framewise_logit.shape
    assert framewise_logit.shape == (b, t, c)
    assert target.shape == (b, c)
    w0, w1 = float(weights[0]), float(weights[1])

    frame_item = jnp.dtype(framewise_logit.dtype).itemsize
    logit_item = jnp.dtype(logit.dtype).itemsize
    target_item = jnp.dtype(target.dtype).itemsize
    # Native sublane multiple for the streamed dtype (f32: 8, bf16: 16, 8-bit: 32).
    sub = {4: 8, 2: 16, 1: 32}.get(frame_item, 8)

    # Lane-density fold: (B, T, C) -> (B, T/k, k*C); max is invariant.
    k = _choose_time_fold(t, c)
    cf = k * c
    t_f = t // k
    frame_folded = framewise_logit.reshape(b, t_f, cf)
    cf_pad = _round_up(cf, 128)

    # B tiling: keep >= 2 (ideally an even number of) B blocks for megacore.
    min_row_bytes = sub * cf_pad * frame_item
    b_tile = _choose_b_tile(b, min_row_bytes, target_block_bytes)
    n_b = b // b_tile

    # T tiling, sized by PADDED VMEM bytes and rounded to the sublane multiple.
    t_tile = max(1, target_block_bytes // (b_tile * cf_pad * frame_item))
    if t_tile >= t_f:
        t_tile = t_f
    else:
        t_tile = max(sub, (t_tile // sub) * sub)
        t_tile = min(t_tile, t_f)
    n_t = pl.cdiv(t_f, t_tile)
    t_tile_pad = _round_up(t_tile, sub)

    # Put the B-block split on a leading axis so every block's last two dims
    # are either full array dims or sublane/lane aligned (free reshapes).
    frame_blocks = frame_folded.reshape(n_b, b_tile, t_f, cf)
    logit_blocks = logit.reshape(n_b, b_tile, c)
    target_blocks = target.reshape(n_b, b_tile, c)

    kernel = functools.partial(
        _bce2way_kernel, w0=w0, w1=w1, inv_n=1.0 / float(b * c),
        k=k, n_class=c, t_valid=t_f, t_tile=t_tile)

    # VMEM budget (padded bytes): 2x framewise block (double-buffered) plus the
    # small resident logit/target/out/scratch buffers plus compiler headroom.
    frame_block_bytes = b_tile * t_tile_pad * cf_pad * frame_item
    small_bytes = (2 * _round_up(b_tile, 8) * _round_up(c, 128)
                   * (logit_item + target_item)
                   + 2 * 8 * 128 * 4
                   + _round_up(b_tile, 8) * cf_pad * 4)
    vmem_limit = 2 * frame_block_bytes + small_bytes + 4 * 1024 * 1024
    vmem_limit = int(min(max(vmem_limit, 16 * 1024 * 1024), 112 * 1024 * 1024))

    cost = pl.CostEstimate(
        flops=int(b * t * c + 16 * b * c),
        transcendentals=int(4 * b * c),
        bytes_accessed=int(b * t * c * frame_item
                           + b * c * (logit_item + target_item)
                           + n_b * 8 * 128 * 4))

    partials = pl.pallas_call(
        kernel,
        out_shape=jax.ShapeDtypeStruct((n_b, 8, 128), jnp.float32),
        grid_spec=pltpu.PrefetchScalarGridSpec(
            num_scalar_prefetch=0,
            grid=(n_b, n_t),
            in_specs=[
                pl.BlockSpec((1, b_tile, c), lambda bi, ti: (bi, 0, 0)),       # logit
                pl.BlockSpec((1, b_tile, c), lambda bi, ti: (bi, 0, 0)),       # target
                pl.BlockSpec((1, b_tile, t_tile, cf),
                             lambda bi, ti: (bi, 0, ti, 0)),                   # frames
            ],
            out_specs=pl.BlockSpec((1, 8, 128), lambda bi, ti: (bi, 0, 0)),
            scratch_shapes=[pltpu.VMEM((b_tile, cf), jnp.float32)],
        ),
        compiler_params=pltpu.CompilerParams(
            dimension_semantics=("parallel", "arbitrary"),
            vmem_limit_bytes=vmem_limit),
        cost_estimate=cost,
    )(logit_blocks, target_blocks, frame_blocks)

    # Tiny final reduction over B blocks (n_b scalars) in plain JAX.
    return jnp.sum(partials[:, 0, 0])


def _reference(logit, framewise_logit, target, weights=(1.0, 0.5)):
    """Pure-JAX reference (matches the PyTorch module's forward)."""
    clip_max = jnp.max(framewise_logit, axis=1).astype(jnp.float32)
    logit = logit.astype(jnp.float32)
    target = target.astype(jnp.float32)
    loss = jnp.mean(_bce_with_logits(logit, target))
    aux = jnp.mean(_bce_with_logits(clip_max, target))
    return weights[0] * loss + weights[1] * aux


if __name__ == "__main__":
    key = jax.random.PRNGKey(0)

    def _check(b, t, c, dtype, target_block_bytes, tag, salt):
        k1, k2, k3 = jax.random.split(jax.random.fold_in(key, salt), 3)
        logit = jax.random.normal(k1, (b, c), dtype=jnp.float32).astype(dtype)
        frames = jax.random.normal(k2, (b, t, c), dtype=jnp.float32).astype(dtype)
        tgt = (jax.random.uniform(k3, (b, c)) > 0.5).astype(jnp.float32)
        out = bce_2way_loss(logit, frames, tgt, weights=(1.0, 0.5),
                            target_block_bytes=target_block_bytes)
        out = jax.block_until_ready(out)
        ref = _reference(logit, frames, tgt, weights=(1.0, 0.5))
        assert jnp.allclose(out, ref, rtol=1e-5, atol=1e-5), (tag, out, ref)

    # Module-sized shapes: (B, C) clip logits + (B, T, C) framewise logits.
    _check(2, 8, 32, jnp.float32, 12 * 1024 * 1024, "small_f32", 0)
    # Multi-step streaming with a ragged last T block and a folded lane dim.
    _check(4, 100, 48, jnp.float32, 48 * 1024, "ragged_f32", 1)
    # bf16 stream (halved HBM traffic), odd B, C >= 128 (no fold).
    _check(3, 72, 160, jnp.bfloat16, 16 * 1024, "bf16_stream", 2)

    print("KERNEL_OK")
</pallas_src>

<mosaic_0001>
module attributes {stable_mosaic.version = 11 : i64} {
  func.func @_bce2way_kernel(%arg0: i32, %arg1: i32, %arg2: memref<1x1x32xf32, #tpu.memory_space<vmem>>, %arg3: memref<1x1x32xf32, #tpu.memory_space<vmem>>, %arg4: memref<1x1x2x128xf32, #tpu.memory_space<vmem>>, %arg5: memref<1x8x128xf32, #tpu.memory_space<vmem>>, %arg6: memref<1x128xf32, #tpu.memory_space<vmem>>) attributes {dimension_semantics = [#tpu.dimension_semantics<parallel>, #tpu.dimension_semantics<arbitrary>], iteration_bounds = array<i64: 2, 1>, scalar_prefetch = 0 : i64, scratch_operands = 1 : i64, tpu.core_type = #tpu.core_type<tc>, window_params = [{transform_indices = @transform_0, window_bounds = array<i64: 1, 1, 32>}, {transform_indices = @transform_1, window_bounds = array<i64: 1, 1, 32>}, {transform_indices = @transform_2, window_bounds = array<i64: 1, 1, 2, 128>}, {transform_indices = @transform_3, window_bounds = array<i64: 1, 8, 128>}]} {
    %c0_i32 = arith.constant 0 : i32
    %0 = arith.cmpi eq, %arg1, %c0_i32 : i32
    %1 = arith.extui %0 : i1 to i32
    %c0_i32_0 = arith.constant 0 : i32
    %2 = arith.cmpi ne, %1, %c0_i32_0 : i32
    scf.if %2 {
      %cst_10 = arith.constant 0xFF800000 : f32
      %12 = vector.broadcast %cst_10 : f32 to vector<1x128xf32>
      %c0_11 = arith.constant 0 : index
      %c0_12 = arith.constant 0 : index
      %13 = vector.load %arg6[%c0_11, %c0_12] : memref<1x128xf32, #tpu.memory_space<vmem>>, vector<1x128xf32>
      tpu.vector_store %arg6[%c0_11, %c0_12], %12 {strides = array<i32>} : memref<1x128xf32, #tpu.memory_space<vmem>>, vector<1x128xf32>,
    } else {
    }
    %c0 = arith.constant 0 : index
    %c0_1 = arith.constant 0 : index
    %c0_2 = arith.constant 0 : index
    %c0_3 = arith.constant 0 : index
    %3 = vector.load %arg4[%c0, %c0_1, %c0_2, %c0_3] : memref<1x1x2x128xf32, #tpu.memory_space<vmem>>, vector<1x1x2x128xf32>
    %4 = vector.shape_cast %3 : vector<1x1x2x128xf32> to vector<1x2x128xf32>
    %cst = arith.constant dense<0xFF800000> : vector<1x128xf32>
    %5 = vector.multi_reduction <maximumf>, %4, %cst [1] : vector<1x2x128xf32> to vector<1x128xf32>
    %c0_4 = arith.constant 0 : index
    %c0_5 = arith.constant 0 : index
    %6 = vector.load %arg6[%c0_4, %c0_5] : memref<1x128xf32, #tpu.memory_space<vmem>>, vector<1x128xf32>
    %7 = arith.maximumf %6, %5 : vector<1x128xf32>
    %c0_6 = arith.constant 0 : index
    %c0_7 = arith.constant 0 : index
    %8 = vector.load %arg6[%c0_6, %c0_7] : memref<1x128xf32, #tpu.memory_space<vmem>>, vector<1x128xf32>
    tpu.vector_store %arg6[%c0_6, %c0_7], %7 {strides = array<i32>} : memref<1x128xf32, #tpu.memory_space<vmem>>, vector<1x128xf32>,
    %c0_i32_8 = arith.constant 0 : i32
    %9 = arith.cmpi eq, %arg1, %c0_i32_8 : i32
    %10 = arith.extui %9 : i1 to i32
    %c0_i32_9 = arith.constant 0 : i32
    %11 = arith.cmpi ne, %10, %c0_i32_9 : i32
    scf.if %11 {
      %c0_10 = arith.constant 0 : index
      %c0_11 = arith.constant 0 : index
      %12 = vector.load %arg6[%c0_10, %c0_11] : memref<1x128xf32, #tpu.memory_space<vmem>>, vector<1x32xf32>
      %c0_12 = arith.constant 0 : index
      %c32 = arith.constant 32 : index
      %13 = vector.load %arg6[%c0_12, %c32] : memref<1x128xf32, #tpu.memory_space<vmem>>, vector<1x32xf32>
      %14 = arith.maximumf %12, %13 : vector<1x32xf32>
      %c0_13 = arith.constant 0 : index
      %c64 = arith.constant 64 : index
      %15 = vector.load %arg6[%c0_13, %c64] : memref<1x128xf32, #tpu.memory_space<vmem>>, vector<1x32xf32>
      %16 = arith.maximumf %14, %15 : vector<1x32xf32>
      %c0_14 = arith.constant 0 : index
      %c96 = arith.constant 96 : index
      %17 = vector.load %arg6[%c0_14, %c96] : memref<1x128xf32, #tpu.memory_space<vmem>>, vector<1x32xf32>
      %18 = arith.maximumf %16, %17 : vector<1x32xf32>
      %c0_15 = arith.constant 0 : index
      %c0_16 = arith.constant 0 : index
      %c0_17 = arith.constant 0 : index
      %19 = vector.load %arg2[%c0_15, %c0_16, %c0_17] : memref<1x1x32xf32, #tpu.memory_space<vmem>>, vector<1x1x32xf32>
      %20 = vector.shape_cast %19 : vector<1x1x32xf32> to vector<1x32xf32>
      %c0_18 = arith.constant 0 : index
      %c0_19 = arith.constant 0 : index
      %c0_20 = arith.constant 0 : index
      %21 = vector.load %arg3[%c0_18, %c0_19, %c0_20] : memref<1x1x32xf32, #tpu.memory_space<vmem>>, vector<1x1x32xf32>
      %22 = vector.shape_cast %21 : vector<1x1x32xf32> to vector<1x32xf32>
      %cst_21 = arith.constant 0.000000e+00 : f32
      %23 = vector.broadcast %cst_21 : f32 to vector<1x32xf32>
      %24 = arith.maximumf %20, %23 : vector<1x32xf32>
      %25 = arith.mulf %20, %22 : vector<1x32xf32>
      %26 = arith.subf %24, %25 : vector<1x32xf32>
      %27 = math.absf %20 : vector<1x32xf32>
      %cst_22 = arith.constant 0.000000e+00 : f32
      %28 = vector.broadcast %cst_22 : f32 to vector<1x32xf32>
      %29 = arith.subf %28, %27 : vector<1x32xf32>
      %30 = math.exp %29 : vector<1x32xf32>
      %31 = math.log1p %30 : vector<1x32xf32>
      %32 = arith.addf %26, %31 : vector<1x32xf32>
      %33 = vector.shape_cast %32 : vector<1x32xf32> to vector<1x1x32xf32>
      %cst_23 = arith.constant dense<0.000000e+00> : vector<1xf32>
      %34 = vector.multi_reduction <add>, %33, %cst_23 [1, 2] : vector<1x1x32xf32> to vector<1xf32>
      %35 = vector.shape_cast %34 : vector<1xf32> to vector<1x1x1xf32>
      %36 = vector.extract %35[0, 0, 0] : f32 from vector<1x1x1xf32>
      %cst_24 = arith.constant 0.000000e+00 : f32
      %37 = vector.broadcast %cst_24 : f32 to vector<1x32xf32>
      %38 = arith.maximumf %18, %37 : vector<1x32xf32>
      %39 = arith.mulf %18, %22 : vector<1x32xf32>
      %40 = arith.subf %38, %39 : vector<1x32xf32>
      %41 = math.absf %18 : vector<1x32xf32>
      %cst_25 = arith.constant 0.000000e+00 : f32
      %42 = vector.broadcast %cst_25 : f32 to vector<1x32xf32>
      %43 = arith.subf %42, %41 : vector<1x32xf32>
      %44 = math.exp %43 : vector<1x32xf32>
      %45 = math.log1p %44 : vector<1x32xf32>
      %46 = arith.addf %40, %45 : vector<1x32xf32>
      %47 = vector.shape_cast %46 : vector<1x32xf32> to vector<1x1x32xf32>
      %cst_26 = arith.constant dense<0.000000e+00> : vector<1xf32>
      %48 = vector.multi_reduction <add>, %47, %cst_26 [1, 2] : vector<1x1x32xf32> to vector<1xf32>
      %49 = vector.shape_cast %48 : vector<1xf32> to vector<1x1x1xf32>
      %50 = vector.extract %49[0, 0, 0] : f32 from vector<1x1x1xf32>
      %cst_27 = arith.constant 1.000000e+00 : f32
      %51 = arith.mulf %cst_27, %36 : f32
      %cst_28 = arith.constant 5.000000e-01 : f32
      %52 = arith.mulf %cst_28, %50 : f32
      %53 = arith.addf %51, %52 : f32
      %cst_29 = arith.constant 1.562500e-02 : f32
      %54 = arith.mulf %53, %cst_29 : f32
      %55 = vector.broadcast %54 : f32 to vector<1x8x128xf32>
      %c0_30 = arith.constant 0 : index
      %c0_31 = arith.constant 0 : index
      %c0_32 = arith.constant 0 : index
      %56 = vector.load %arg5[%c0_30, %c0_31, %c0_32] : memref<1x8x128xf32, #tpu.memory_space<vmem>>, vector<1x8x128xf32>
      tpu.vector_store %arg5[%c0_30, %c0_31, %c0_32], %55 {strides = array<i32>} : memref<1x8x128xf32, #tpu.memory_space<vmem>>, vector<1x8x128xf32>,
    } else {
    }
    return
  }
  func.func @transform_0(%arg0: i32, %arg1: i32) -> (i32, i32, i32) {
    %c0_i32 = arith.constant 0 : i32
    %c0_i32_0 = arith.constant 0 : i32
    %c0_i32_1 = arith.constant 0 : i32
    return %arg0, %c0_i32, %c0_i32_0 : i32, i32, i32
  }
  func.func @transform_1(%arg0: i32, %arg1: i32) -> (i32, i32, i32) {
    %c0_i32 = arith.constant 0 : i32
    %c0_i32_0 = arith.constant 0 : i32
    %c0_i32_1 = arith.constant 0 : i32
    return %arg0, %c0_i32, %c0_i32_0 : i32, i32, i32
  }
  func.func @transform_2(%arg0: i32, %arg1: i32) -> (i32, i32, i32, i32) {
    %c0_i32 = arith.constant 0 : i32
    %c0_i32_0 = arith.constant 0 : i32
    %c0_i32_1 = arith.constant 0 : i32
    return %arg0, %c0_i32, %arg1, %c0_i32_0 : i32, i32, i32, i32
  }
  func.func @transform_3(%arg0: i32, %arg1: i32) -> (i32, i32, i32) {
    %c0_i32 = arith.constant 0 : i32
    %c0_i32_0 = arith.constant 0 : i32
    %c0_i32_1 = arith.constant 0 : i32
    return %arg0, %c0_i32, %c0_i32_0 : i32, i32, i32
  }
}

</mosaic_0001>

<llo_original>
// kernel: tpu_custom_call.1
$region0: #{tpu_custom_call.1}
  #allocation0 [shape = 'u32[]', space=smem, size = 0x4, offset = 0x4, fixed_abs, tag = 'smem constant byte address 0x4 - core index']
  #allocation1 [shape = 'u32[144,128]{1,0:T(1,128)}', space=vmem, size = 0x12000, scoped, tag = 'internal scratch']
  #allocation2 [shape = 'f32[1,128]{1,0:T(1,128)}', space=vmem, size = 0x200, scoped, tag = 'scratch operand']
  %s0 = inlined_call_operand.hbm [shape: f32[2,1,32], index: 0, kind: input, shape index: {}]
  %s1 = inlined_call_operand.vmem [shape: f32[2,1,32], index: 1, kind: input, shape index: {}]
  %s2 = inlined_call_operand.vmem [shape: f32[2,1,2,128], index: 2, kind: input, shape index: {}]
  %s3 = inlined_call_operand.hbm [shape: f32[2,8,128], index: 3, kind: output, shape index: {}]
  %s4 = sld [smem:[#allocation0]]
  $region57: #{tpu_custom_call.1} parent=0
    _
  %s6 = ssub.s32 1, %s4
  %s7 = scalar_select 0, %s6, %s4
  $region1: #{tpu_custom_call.1} parent=0
    #allocation3 [shape = 'u8[1024]{0}', space=vmem, size = 0x400, scoped, tag = 'input window, operand 0']
    #allocation4 [shape = 's32[2]{0}', space=sflag, size = 0x8, scoped, tag = 'scoped memory for tpu_custom_call.1']
    #allocation5 [shape = 's32[2]{0}', space=sflag, size = 0x8, scoped, tag = 'scoped memory for tpu_custom_call.1']
    #allocation6 [shape = 'u8[8192]{0}', space=vmem, size = 0x2000, scoped, tag = 'output window, operand 0']
    %8 = vsyncpa [#allocation4], 0
    %s9 = scalar_lea.sflag [#allocation4], 1
    %10 = vsyncpa %s9, 0
    %11 = vsyncpa [#allocation5], 0
    %s12 = scalar_lea.sflag [#allocation5], 1
    %13 = vsyncpa %s12, 0
    loop: start=0, step=1, limit=4
    $region2: #{tpu_custom_call.1} parent=1 // loop_pre_header
      _
    $region3: #{tpu_custom_call.1} parent=1 // loop_header
      %s15 = sphi 0, %s19
      %p16 = scmp.ge.s32.totalorder %s15, 4
      %s22 = sphi 0, %s34
      %s23 = sphi 0, %s30
      %s24 = sphi 0, %s22
      %s25 = sphi 0, %s23
      %s26 = sphi 0, %s24
      %s27 = sphi 0, %s25
      %s37 = sphi 0, %s39
      %s40 = sphi 0, %s37
      %s41 = sphi 0, %s40
      %s57 = sphi 0, %s41
      %s63 = sphi 0, %s65
      %s66 = sphi 0, %s63
      %s67 = sphi 0, %s66
      %s83 = sphi 0, %s67
      %s91 = sphi 0, %s93
      %s94 = sphi 0, %s91
      %s95 = sphi 0, %s94
      %s111 = sphi 0, %s95
      %s117 = sphi 0, %s119
      %s120 = sphi 0, %s117
      %s121 = sphi 0, %s120
      %s137 = sphi 0, %s121
    $region4: #{tpu_custom_call.1} parent=1 // loop_header_branch
      %18 = sbr.rel (%p16) target = $region8
    $region5: #{tpu_custom_call.1} parent=1 // loop_body
      %s20 = ssub.s32 %s15, 1
      %s21 = ssub.s32 %s15, 2
      %s28 = sadd.s32 1, %s23
      %p29 = scmp.ge.s32.totalorder %s28, 1
      %s30 = scalar_select %p29, 0, %s28
      %s31 = sadd.s32 1, %s22
      %s32 = scalar_select %p29, %s31, %s22
      %p33 = scmp.ge.s32.totalorder %s32, 2
      %s34 = scalar_select %p33, 0, %s32
      %s35 = ssub.s32 %s22, %s34
      %p36 = scmp.eq.s32.totalorder %s35, 0
      %s38 = sadd.s32 %s37, 1
      %s39 = scalar_select %p36, %s37, %s38
      %p42 = pneg %p36
      %p43 = scmp.eq.s32.totalorder %s15, 1
      %p44 = por %p42, %p43
      %p45 = scmp.ne.s32.totalorder %s37, %s40
      %p46 = scmp.eq.s32.totalorder %s15, 0
      %p47 = por %p45, %p46
      %p48 = scmp.ne.s32.totalorder %s37, %s40
      %p49 = scmp.eq.s32.totalorder %s20, 1
      %p50 = por %p48, %p49
      %p51 = scmp.ne.s32.totalorder %s40, %s41
      %p52 = scmp.eq.s32.totalorder %s20, 0
      %p53 = por %p51, %p52
      %p54 = scmp.ne.s32.totalorder %s40, %s41
      %p55 = scmp.eq.s32.totalorder %s21, 1
      %p56 = por %p54, %p55
      %p58 = scmp.ne.s32.totalorder %s41, %s57
      %p59 = scmp.eq.s32.totalorder %s21, 0
      %p60 = por %p58, %p59
      %s61 = ssub.s32 %s22, %s34
      %p62 = scmp.eq.s32.totalorder %s61, 0
      %s64 = sadd.s32 %s63, 1
      %s65 = scalar_select %p62, %s63, %s64
      %p68 = pneg %p62
      %p69 = scmp.eq.s32.totalorder %s15, 1
      %p70 = por %p68, %p69
      %p71 = scmp.ne.s32.totalorder %s63, %s66
      %p72 = scmp.eq.s32.totalorder %s15, 0
      %p73 = por %p71, %p72
      %p74 = scmp.ne.s32.totalorder %s63, %s66
      %p75 = scmp.eq.s32.totalorder %s20, 1
      %p76 = por %p74, %p75
      %p77 = scmp.ne.s32.totalorder %s66, %s67
      %p78 = scmp.eq.s32.totalorder %s20, 0
      %p79 = por %p77, %p78
      %p80 = scmp.ne.s32.totalorder %s66, %s67
      %p81 = scmp.eq.s32.totalorder %s21, 1
      %p82 = por %p80, %p81
      %p84 = scmp.ne.s32.totalorder %s67, %s83
      %p85 = scmp.eq.s32.totalorder %s21, 0
      %p86 = por %p84, %p85
      %s87 = ssub.s32 %s22, %s34
      %s88 = ssub.s32 %s23, %s30
      %s89 = sor.u32 %s87, %s88
      %p90 = scmp.eq.s32.totalorder %s89, 0
      %s92 = sadd.s32 %s91, 1
      %s93 = scalar_select %p90, %s91, %s92
      %p96 = pneg %p90
      %p97 = scmp.eq.s32.totalorder %s15, 1
      %p98 = por %p96, %p97
      %p99 = scmp.ne.s32.totalorder %s91, %s94
      %p100 = scmp.eq.s32.totalorder %s15, 0
      %p101 = por %p99, %p100
      %p102 = scmp.ne.s32.totalorder %s91, %s94
      %p103 = scmp.eq.s32.totalorder %s20, 1
      %p104 = por %p102, %p103
      %p105 = scmp.ne.s32.totalorder %s94, %s95
      %p106 = scmp.eq.s32.totalorder %s20, 0
      %p107 = por %p105, %p106
      %p108 = scmp.ne.s32.totalorder %s94, %s95
      %p109 = scmp.eq.s32.totalorder %s21, 1
      %p110 = por %p108, %p109
      %p112 = scmp.ne.s32.totalorder %s95, %s111
      %p113 = scmp.eq.s32.totalorder %s21, 0
      %p114 = por %p112, %p113
      %s115 = ssub.s32 %s22, %s34
      %p116 = scmp.eq.s32.totalorder %s115, 0
      %s118 = sadd.s32 %s117, 1
      %s119 = scalar_select %p116, %s117, %s118
      %p122 = pneg %p116
      %p123 = scmp.eq.s32.totalorder %s15, 1
      %p124 = por %p122, %p123
      %p125 = scmp.ne.s32.totalorder %s117, %s120
      %p126 = scmp.eq.s32.totalorder %s15, 0
      %p127 = por %p125, %p126
      %p128 = scmp.ne.s32.totalorder %s117, %s120
      %p129 = scmp.eq.s32.totalorder %s20, 1
      %p130 = por %p128, %p129
      %p131 = scmp.ne.s32.totalorder %s120, %s121
      %p132 = scmp.eq.s32.totalorder %s20, 0
      %p133 = por %p131, %p132
      %p134 = scmp.ne.s32.totalorder %s120, %s121
      %p135 = scmp.eq.s32.totalorder %s21, 1
      %p136 = por %p134, %p135
      %p138 = scmp.ne.s32.totalorder %s121, %s137
      %p139 = scmp.eq.s32.totalorder %s21, 0
      %p140 = por %p138, %p139
      %p141 = scmp.le.s32.totalorder 1, %s15
      %p142 = scmp.lt.s32.totalorder %s15, 3
      %p143 = pnand %p141, %p142
      %p144 = pneg %p143
      // Predicated region
      $region9: #{tpu_custom_call.1} parent=5 // pred_check
        _
      $region10: #{tpu_custom_call.1} parent=5 // pred_check_branch
        %146 = sbr.rel (%p143) target = $region12
      $region11: #{tpu_custom_call.1} parent=5 // pred_region
        %s147 = ssub.s32 %s15, 1
      $region12: #{tpu_custom_call.1} parent=5 // pred_fallthru
        _
      %p148 = scmp.lt.s32.totalorder %s15, 2
      // Predicated region
      $region13: #{tpu_custom_call.1} parent=5 // pred_check
        %p149 = pneg %p148
      $region14: #{tpu_custom_call.1} parent=5 // pred_check_branch
        %151 = sbr.rel (%p149) target = $region16
      $region15: #{tpu_custom_call.1} parent=5 // pred_region
        // Predicated region
        $region17: #{tpu_custom_call.1} parent=15 // pred_check
          %p152 = pneg %p47
        $region18: #{tpu_custom_call.1} parent=15 // pred_check_branch
          %154 = sbr.rel (%p152) target = $region20
        $region19: #{tpu_custom_call.1} parent=15 // pred_region
          %s155 = sand.u32 %s37, 1
          %s156 = scalar_lea.sflag [#allocation4], %s155
          %s157 = sand.u32 %s37, 1
          %s158 = scalar_lea.vmem [#allocation3], %s157
          %s160 = ssub.s32 16, 16
          %161 = vsyncadd %s156, %s160
          %s162 = smul.addr %s22, 16
          %s163 = scalar_lea.hbm %s0, %s162
          %s165 = sshll.u32 %s158, 4
          %s166 = int_to_ptr.vmem [resolvable:$true] %s165
          %168 = dma.hbm_to_vmem [thread:$0]  %s163, 16, %s166, %s156
        $region20: #{tpu_custom_call.1} parent=15 // pred_fallthru
          _
        // Predicated region
        $region21: #{tpu_custom_call.1} parent=15 // pred_check
          %p169 = pneg %p73
        $region22: #{tpu_custom_call.1} parent=15 // pred_check_branch
          %171 = sbr.rel (%p169) target = $region24
        $region23: #{tpu_custom_call.1} parent=15 // pred_region
          %p172 = scmp.lt.s32.totalorder %s22, 1
          %s173 = scalar_select %p172, %s22, 1
          %s174 = scalar_lea.vmem %s1, %s173
        $region24: #{tpu_custom_call.1} parent=15 // pred_fallthru
          _
        // Predicated region
        $region25: #{tpu_custom_call.1} parent=15 // pred_check
          %p175 = pneg %p101
        $region26: #{tpu_custom_call.1} parent=15 // pred_check_branch
          %177 = sbr.rel (%p175) target = $region28
        $region27: #{tpu_custom_call.1} parent=15 // pred_region
          %p178 = scmp.lt.s32.totalorder %s22, 1
          %s179 = scalar_select %p178, %s22, 1
          %p180 = scmp.lt.s32.totalorder %s23, 0
          %s181 = scalar_select %p180, %s23, 0
          %s182 = sadd.s32 %s181, %s179
          %s183 = smul.addr %s182, 2
          %s184 = scalar_lea.vmem %s2, %s183
        $region28: #{tpu_custom_call.1} parent=15 // pred_fallthru
          _
      $region16: #{tpu_custom_call.1} parent=5 // pred_fallthru
        _
      %p185 = scmp.le.s32.totalorder 1, %s15
      %p186 = scmp.lt.s32.totalorder %s15, 3
      %p187 = pnand %p185, %p186
      %p188 = pneg %p187
      // Predicated region
      $region29: #{tpu_custom_call.1} parent=5 // pred_check
        _
      $region30: #{tpu_custom_call.1} parent=5 // pred_check_branch
        %190 = sbr.rel (%p187) target = $region32
      $region31: #{tpu_custom_call.1} parent=5 // pred_region
        %s191 = ssub.s32 %s15, 1
        %s192 = sand.u32 %s40, 1
        %s193 = scalar_lea.sflag [#allocation4], %s192
        %s194 = sand.u32 %s40, 1
        %s195 = scalar_lea.vmem [#allocation3], %s194
        // Predicated region
        $region33: #{tpu_custom_call.1} parent=31 // pred_check
          %p196 = pneg %p53
        $region34: #{tpu_custom_call.1} parent=31 // pred_check_branch
          %198 = sbr.rel (%p196) target = $region36
        $region35: #{tpu_custom_call.1} parent=31 // pred_region
          %199 = dma.done %s193, 16
        $region36: #{tpu_custom_call.1} parent=31 // pred_fallthru
          _
        %s200 = sand.u32 %s40, 1
        %s201 = scalar_lea.sflag [#allocation4], %s200
        %s202 = sand.u32 %s40, 1
        %s203 = scalar_lea.vmem [#allocation3], %s202
        %p204 = pneg %p53
        %p205 = pneg %p50
        %p206 = scmp.lt.s32.totalorder %s24, 1
        %s207 = scalar_select %p206, %s24, 1
        %s208 = scalar_lea.vmem %s1, %s207
        %p209 = pneg %p79
        %p210 = pneg %p76
        %p211 = scmp.lt.s32.totalorder %s24, 1
        %s212 = scalar_select %p211, %s24, 1
        %p213 = scmp.lt.s32.totalorder %s25, 0
        %s214 = scalar_select %p213, %s25, 0
        %s215 = sadd.s32 %s214, %s212
        %s216 = smul.addr %s215, 2
        %s217 = scalar_lea.vmem %s2, %s216
        %p218 = pneg %p107
        %p219 = pneg %p104
        %p220 = pneg %p133
        %p221 = pneg %p130
        %s222 = sand.u32 %s120, 1
        %s223 = scalar_lea.sflag [#allocation5], %s222
        %s224 = sand.u32 %s120, 1
        %s225 = smul.addr %s224, 8
        %s226 = scalar_lea.vmem [#allocation6], %s225
        %p227 = scmp.lt.s32.totalorder %s24, 1
        %s228 = scalar_select %p227, %s24, 1
        %s229 = scalar_lea.vmem %s1, %s228
        %p230 = scmp.lt.s32.totalorder %s24, 1
        %s231 = scalar_select %p230, %s24, 1
        %p232 = scmp.lt.s32.totalorder %s25, 0
        %s233 = scalar_select %p232, %s25, 0
        %s234 = sadd.s32 %s233, %s231
        %s235 = smul.addr %s234, 2
        %s236 = scalar_lea.vmem %s2, %s235
        %p237 = scmp.eq.s32.totalorder %s25, 0
        // Predicated region
        $region37: #{tpu_custom_call.1} parent=31 // pred_check
          %p238 = pneg %p237
        $region38: #{tpu_custom_call.1} parent=31 // pred_check_branch
          %240 = sbr.rel (%p238) target = $region40
        $region39: #{tpu_custom_call.1} parent=31 // pred_region
          %241 = vst [vmem:[#allocation2] sm:$0x1] -inf
        $region40: #{tpu_custom_call.1} parent=31 // pred_fallthru
          _
        %v242 = vld [vmem:[%s236] sm:$0x3]
        %vm243 = vcmask 1041408
        %v244 = vsel %vm243, %v242, -inf
        %v245 = vrot.slane %v244, 4
        %v246 = vmax.f32 %v244, %v245
        %v247 = vrot.slane %v246, 2
        %v248 = vmax.f32 %v246, %v247
        %v249 = vrot.slane %v248, 1
        %v250 = vmax.f32 %v248, %v249
        %v251 = vld [vmem:[#allocation2] sm:$0x1]
        %v252 = vmax.f32 %v251, %v250
        %253 = vst [vmem:[#allocation2] sm:$0x1] %v252
        // Predicated region
        $region41: #{tpu_custom_call.1} parent=31 // pred_check
          %p254 = pneg %p237
        $region42: #{tpu_custom_call.1} parent=31 // pred_check_branch
          %256 = sbr.rel (%p254) target = $region44
        $region43: #{tpu_custom_call.1} parent=31 // pred_region
          %v257 = vld [vmem:[#allocation2] sm:$0x1]
          %259 = vrot.lane.b32.xlu0 %v257, 96
          %v260 = vpop.permute.xlu0 %259
          %v262 = vmax.f32 %v257, %v260
          %263 = vrot.lane.b32.xlu0 %v257, 64
          %v264 = vpop.permute.xlu0 %263
          %v266 = vmax.f32 %v262, %v264
          %267 = vrot.lane.b32.xlu0 %v257, 32
          %v268 = vpop.permute.xlu0 %267
          %v270 = vmax.f32 %v266, %v268
          %v271 = vld [vmem:[%s195] sm:$0x1]
          %v272 = vld [vmem:[%s229] sm:$0x1]
          %v273 = vmax.f32 %v271, 0.0
          %v274 = vmul.f32 %v271, %v272
          %v275 = vsub.f32 %v273, %v274
          %v276 = vand.u32 2147483647, %v271
          %v277 = vsub.f32 0.0, %v276
          %v278 = vmul.f32 %v277, 1.442695
          %v279 = vpow.pop %v278
          %v280 = vadd.f32 %v279, 1.0
          %v281 = vlog2.pop %v280
          %v282 = vmul.f32 %v281, 0.6931472
          %v283 = vmul.f32 -0.5, %v279
          %v284 = vadd.f32 %v283, 1.0
          %v285 = vmul.f32 %v284, %v279
          %v286 = vand.u32 2147483647, %v279
          %vm287 = vcmp.lt.f32.partialorder %v286, 0.0004427343
          %v288 = vsel %vm287, %v285, %v282
          %v289 = vadd.f32 %v275, %v288
          %vm290 = vcmask 253952
          %v291 = vsel %vm290, %v289, 0.0
          %292 = vadd.xlane.f32.xlu0 %v291
          %v293 = vpop.xlane.xlu0 %292
          %v294 = vrot.slane %v293, 4
          %v295 = vadd.f32 %v293, %v294
          %v296 = vrot.slane %v295, 2
          %v297 = vadd.f32 %v295, %v296
          %v298 = vrot.slane %v297, 1
          %v299 = vadd.f32 %v297, %v298
          %s300 = vtos %v299
          %v301 = vmax.f32 %v270, 0.0
          %v302 = vmul.f32 %v270, %v272
          %v303 = vsub.f32 %v301, %v302
          %v304 = vand.u32 2147483647, %v270
          %v305 = vsub.f32 0.0, %v304
          %v306 = vmul.f32 %v305, 1.442695
          %v307 = vpow.pop %v306
          %v308 = vadd.f32 %v307, 1.0
          %v309 = vlog2.pop %v308
          %v310 = vmul.f32 %v309, 0.6931472
          %v311 = vmul.f32 -0.5, %v307
          %v312 = vadd.f32 %v311, 1.0
          %v313 = vmul.f32 %v312, %v307
          %v314 = vand.u32 2147483647, %v307
          %vm315 = vcmp.lt.f32.partialorder %v314, 0.0004427343
          %v316 = vsel %vm315, %v313, %v310
          %v317 = vadd.f32 %v303, %v316
          %v318 = vsel %vm290, %v317, 0.0
          %319 = vadd.xlane.f32.xlu0 %v318
          %v320 = vpop.xlane.xlu0 %319
          %v321 = vrot.slane %v320, 4
          %v322 = vadd.f32 %v320, %v321
          %v323 = vrot.slane %v322, 2
          %v324 = vadd.f32 %v322, %v323
          %v325 = vrot.slane %v324, 1
          %v326 = vadd.f32 %v324, %v325
          %s327 = vtos %v326
          %s328 = smul.f32 %s327, 0.5
          %s329 = sadd.f32 %s300, %s328
          %s330 = smul.f32 %s329, 0.015625
          %v331 = vstv %s330
          %332 = vst [vmem:[%s226] sm:$0xff] %v331
        $region44: #{tpu_custom_call.1} parent=31 // pred_fallthru
          _
        %s333 = sand.u32 %s120, 1
        %s334 = scalar_lea.sflag [#allocation5], %s333
        %s335 = sand.u32 %s120, 1
        %s336 = smul.addr %s335, 8
        %s337 = scalar_lea.vmem [#allocation6], %s336
        // Predicated region
        $region45: #{tpu_custom_call.1} parent=31 // pred_check
          %p338 = pneg %p130
        $region46: #{tpu_custom_call.1} parent=31 // pred_check_branch
          %340 = sbr.rel (%p338) target = $region48
        $region47: #{tpu_custom_call.1} parent=31 // pred_region
          %s342 = ssub.s32 128, 128
          %343 = vsyncadd %s334, %s342
          %s344 = smul.addr %s24, 128
          %s345 = scalar_lea.hbm %s3, %s344
          %s347 = sshll.u32 %s337, 4
          %s348 = int_to_ptr.vmem [resolvable:$true] %s347
          %350 = dma.vmem_to_hbm [thread:$0]  %s348, 128, %s345, %s334
        $region48: #{tpu_custom_call.1} parent=31 // pred_fallthru
          _
      $region32: #{tpu_custom_call.1} parent=5 // pred_fallthru
        _
      %p351 = scmp.le.s32.totalorder 2, %s15
      // Predicated region
      $region49: #{tpu_custom_call.1} parent=5 // pred_check
        %p352 = pneg %p351
      $region50: #{tpu_custom_call.1} parent=5 // pred_check_branch
        %354 = sbr.rel (%p352) target = $region52
      $region51: #{tpu_custom_call.1} parent=5 // pred_region
        %s355 = ssub.s32 %s15, 2
        // Predicated region
        $region53: #{tpu_custom_call.1} parent=51 // pred_check
          %p356 = pneg %p136
        $region54: #{tpu_custom_call.1} parent=51 // pred_check_branch
          %358 = sbr.rel (%p356) target = $region56
        $region55: #{tpu_custom_call.1} parent=51 // pred_region
          %s359 = sand.u32 %s121, 1
          %s360 = scalar_lea.sflag [#allocation5], %s359
          %s361 = sand.u32 %s121, 1
          %s362 = smul.addr %s361, 8
          %s363 = scalar_lea.vmem [#allocation6], %s362
          %364 = dma.done %s360, 128
        $region56: #{tpu_custom_call.1} parent=51 // pred_fallthru
          _
      $region52: #{tpu_custom_call.1} parent=5 // pred_fallthru
        _
    $region6: #{tpu_custom_call.1} parent=1 // loop_footer
      %s19 = sadd.s32 1, %s15
    $region7: #{tpu_custom_call.1} parent=1 // loop_footer_branch
      %14 = sbr.rel target = $region3
    $region8: #{tpu_custom_call.1} parent=1 // loop_exit
      _
    %365 = vsyncpa [#allocation4], 1
    %s366 = scalar_lea.sflag [#allocation4], 1
    %367 = vsyncpa %s366, 1
    %368 = vsyncpa [#allocation5], 1
    %s369 = scalar_lea.sflag [#allocation5], 1
    %370 = vsyncpa %s369, 1

</llo_original>
